<compile_context>
chip_gen: v5e
topology: v5e:2x2
jax: 0.10.0
libtpu: 0.0.40
codegen_flags: <defaults>
</compile_context>

<pallas_src>
import functools

import jax
import jax.numpy as jnp
from jax import lax
from jax.experimental import pallas as pl
from jax.experimental.pallas import tpu as pltpu


# --------------------------------------------------------------------------
# Helpers
# --------------------------------------------------------------------------

def _pick_tile(n, unit, target):
    """Largest multiple of `unit` that divides n and is <= target; else full n."""
    t = (min(target, n) // unit) * unit
    while t >= unit:
        if n % t == 0:
            return t
        t -= unit
    return n


def _row_tile(n, unit, target):
    """Row tile kept <= n//2 when possible so the 'parallel' row axis has >= 2
    grid steps and both v7x TensorCores get work."""
    return _pick_tile(n, unit, min(target, max(unit, n // 2)))


def _query_vmem_cap():
    try:
        return int(pltpu.get_tpu_info().vmem_capacity_bytes)
    except Exception:
        return 128 << 20           # v5e/v6e default if the query is unavailable


_VMEM_CAP = _query_vmem_cap()


def _vmem_limit(block_bytes):
    """Scoped-VMEM limit: 2x blocks (double buffering) + headroom, clamped to
    ~70% of physical VMEM (<= ~45 MiB on v7x, up to ~90-100 MiB on v5e/v6e)."""
    hi = max(32 << 20, min(100 << 20, int(0.70 * _VMEM_CAP)))
    return int(min(hi, max(32 << 20, 2 * block_bytes + (4 << 20))))


def _cparams(semantics, block_bytes):
    return pltpu.CompilerParams(
        dimension_semantics=semantics,
        vmem_limit_bytes=_vmem_limit(block_bytes),
    )


# --------------------------------------------------------------------------
# Kernels
# --------------------------------------------------------------------------

def _degree_cast_kernel(a_ref, abf_ref, dinv_ref, acc_ref):
    """One pass over the binary adjacency: emit a bf16 copy (exact for 0/1) and
    accumulate row sums; finalize D^-1/2 at the last column tile.

    Matches OpenGSL Normalize(add_loop=False): zero-degree rows -> 0.
    """
    k = pl.program_id(1)

    @pl.when(k == 0)
    def _():
        acc_ref[...] = jnp.zeros_like(acc_ref)

    a = a_ref[...]                                    # f32 (tm, tk)
    abf_ref[...] = a.astype(abf_ref.dtype)
    acc_ref[...] += jnp.sum(a, axis=-1, keepdims=True)

    @pl.when(k == pl.num_programs(1) - 1)
    def _():
        d = acc_ref[...]
        dinv_ref[...] = jnp.where(d > 0.0, lax.rsqrt(d), 0.0)


def _xw_scale_kernel(x_ref, w_ref, dinv_ref, o_ref):
    """Y = dinv ⊙ (X @ W) for one row tile (right-hand D^-1/2 of the GCN layer).
    bf16 operands on the MXU, f32 accumulation."""
    xb = x_ref[...].astype(jnp.bfloat16)
    wb = w_ref[...].astype(jnp.bfloat16)
    y = jnp.dot(xb, wb, preferred_element_type=jnp.float32)
    o_ref[...] = (y * dinv_ref[...]).astype(o_ref.dtype)


def _gcn_agg_kernel(a_ref, y_ref, dinv_ref, b_ref, o_ref, acc_ref, *, apply_relu):
    """H = relu?(dinv ⊙ (A @ Y) + b), tiled over (row, contraction) grid."""
    k = pl.program_id(1)

    @pl.when(k == 0)
    def _():
        acc_ref[...] = jnp.zeros_like(acc_ref)

    acc_ref[...] += jnp.dot(a_ref[...], y_ref[...],
                            preferred_element_type=jnp.float32)

    @pl.when(k == pl.num_programs(1) - 1)
    def _():
        h = acc_ref[...] * dinv_ref[...] + b_ref[...]
        if apply_relu:
            h = jnp.maximum(h, 0.0)
        o_ref[...] = h.astype(o_ref.dtype)


def _gcn_agg_rownorm_kernel(a_ref, y_ref, dinv_ref, b_ref, en_ref, et_ref, acc_ref):
    """Last graph-GCN layer with row-L2 normalization fused into the finalize step
    (Normalize('row-norm', p=2)); also emits the transposed bf16 embeddings so the
    downstream E·E^T tiles are plain (tm,F)@(F,tn) dots (no per-tile transpose)."""
    k = pl.program_id(1)

    @pl.when(k == 0)
    def _():
        acc_ref[...] = jnp.zeros_like(acc_ref)

    acc_ref[...] += jnp.dot(a_ref[...], y_ref[...],
                            preferred_element_type=jnp.float32)

    @pl.when(k == pl.num_programs(1) - 1)
    def _():
        h = acc_ref[...] * dinv_ref[...] + b_ref[...]          # (tm, F) f32
        nrm = jnp.sqrt(jnp.sum(h * h, axis=-1, keepdims=True))
        hn = h / jnp.maximum(nrm, 1e-12)
        en_ref[...] = hn.astype(en_ref.dtype)
        et_ref[...] = hn.T.astype(et_ref.dtype)                # one transpose per row tile


def _topk_threshold_kernel(e_row_ref, e_t_ref, kth_ref, topk_ref, *, k):
    """Per-row K-th largest similarity via a running top-K over column tiles of
    S = E E^T; S never touches HBM and VMEM is independent of N."""
    j = pl.program_id(1)

    @pl.when(j == 0)
    def _():
        topk_ref[...] = jnp.full_like(topk_ref, -jnp.inf)

    s = jnp.dot(e_row_ref[...], e_t_ref[...],
                preferred_element_type=jnp.float32)            # (tm, tnc)
    work = jnp.concatenate([s, topk_ref[...]], axis=-1)        # (tm, tnc + K)
    # K unrolled max-extraction passes.
    # TODO(synk): tie handling differs from torch.topk (all tied maxima removed per
    # pass); ties do not occur for generic float similarities.
    tops = []
    for _ in range(k):
        m = jnp.max(work, axis=-1, keepdims=True)
        tops.append(m)
        work = jnp.where(work >= m, -jnp.inf, work)
    topk_ref[...] = jnp.concatenate(tops, axis=-1)             # running top-K

    @pl.when(j == pl.num_programs(1) - 1)
    def _():
        kth_ref[...] = tops[-1]                                # global K-th largest


def _sym_fuse_kernel(e_i_ref, e_t_ref, kth_r_ref, kth_c_ref, adj_ref,
                     new_ref, finbf_ref, dinv_ref, deg_ref):
    """(i,j) tile of A_new = topK(S) + topK(S)^T and A_final = A_new + Adj, with the
    revised graph's D^-1/2 accumulated in-pass (no separate degree read of A_final).

    S = E E^T is symmetric, so A_new[j,i] only needs the column rows' thresholds:
    no full-matrix transpose and S never touches HBM.
    """
    j = pl.program_id(1)

    @pl.when(j == 0)
    def _():
        deg_ref[...] = jnp.zeros_like(deg_ref)

    s = jnp.dot(e_i_ref[...], e_t_ref[...],
                preferred_element_type=jnp.float32)            # (tm, tn)
    keep_r = s >= kth_r_ref[...]       # A_new[i, j] kept by row i's top-K
    keep_c = s >= kth_c_ref[...]       # A_new[j, i] kept by row j's top-K
    # TODO(synk): OpenGSL Symmetry may use (A + A^T)/2; original GRCN uses A + A^T.
    a_sym = jnp.where(keep_r, s, 0.0) + jnp.where(keep_c, s, 0.0)
    fin = a_sym + adj_ref[...].astype(jnp.float32)             # Interpolate(1, 1)
    new_ref[...] = a_sym
    finbf_ref[...] = fin.astype(finbf_ref.dtype)               # bf16 for the task GCN
    deg_ref[...] += jnp.sum(fin, axis=-1, keepdims=True)       # f32 degree (pre-cast)

    @pl.when(j == pl.num_programs(1) - 1)
    def _():
        d = deg_ref[...]
        dinv_ref[...] = jnp.where(d > 0.0, lax.rsqrt(d), 0.0)


# --------------------------------------------------------------------------
# Wrappers
# --------------------------------------------------------------------------

def degree_cast(adj):
    n = adj.shape[0]
    tm = _row_tile(n, 8, 256)
    tk = _pick_tile(n, 128, 2048)
    blk = tm * tk * (4 + 2) + tm * 4 * 2
    return pl.pallas_call(
        _degree_cast_kernel,
        out_shape=(jax.ShapeDtypeStruct((n, n), jnp.bfloat16),
                   jax.ShapeDtypeStruct((n, 1), jnp.float32)),
        grid=(n // tm, n // tk),
        in_specs=[pl.BlockSpec((tm, tk), lambda i, k: (i, k))],
        out_specs=(pl.BlockSpec((tm, tk), lambda i, k: (i, k)),
                   pl.BlockSpec((tm, 1), lambda i, k: (i, 0))),
        scratch_shapes=[pltpu.VMEM((tm, 1), jnp.float32)],
        compiler_params=_cparams(("parallel", "arbitrary"), blk),
    )(adj)


def xw_scale(x, w, dinv):
    n, f = x.shape
    h = w.shape[1]
    tm = _row_tile(n, 8, 512)
    blk = tm * f * 4 + f * h * 4 + tm * 4 + tm * h * 2
    return pl.pallas_call(
        _xw_scale_kernel,
        out_shape=jax.ShapeDtypeStruct((n, h), jnp.bfloat16),
        grid=(n // tm,),
        in_specs=[
            pl.BlockSpec((tm, f), lambda i: (i, 0)),
            pl.BlockSpec((f, h), lambda i: (0, 0)),     # weights VMEM-resident
            pl.BlockSpec((tm, 1), lambda i: (i, 0)),
        ],
        out_specs=pl.BlockSpec((tm, h), lambda i: (i, 0)),
        compiler_params=_cparams(("parallel",), blk),
    )(x, w, dinv)


def gcn_aggregate(a_bf, y_bf, dinv, b, apply_relu):
    n = a_bf.shape[0]
    h = y_bf.shape[1]
    tm = _row_tile(n, 8, 512)
    tk = _pick_tile(n, 128, 2048)
    blk = tm * tk * 2 + tk * h * 2 + tm * 4 + h * 4 + tm * h * 8
    return pl.pallas_call(
        functools.partial(_gcn_agg_kernel, apply_relu=apply_relu),
        out_shape=jax.ShapeDtypeStruct((n, h), jnp.float32),
        grid=(n // tm, n // tk),
        in_specs=[
            pl.BlockSpec((tm, tk), lambda i, k: (i, k)),
            pl.BlockSpec((tk, h), lambda i, k: (k, 0)),
            pl.BlockSpec((tm, 1), lambda i, k: (i, 0)),
            pl.BlockSpec((1, h), lambda i, k: (0, 0)),
        ],
        out_specs=pl.BlockSpec((tm, h), lambda i, k: (i, 0)),
        scratch_shapes=[pltpu.VMEM((tm, h), jnp.float32)],
        compiler_params=_cparams(("parallel", "arbitrary"), blk),
    )(a_bf, y_bf, dinv, b)


def gcn_aggregate_rownorm(a_bf, y_bf, dinv, b):
    n = a_bf.shape[0]
    f = y_bf.shape[1]
    # tm must be a multiple of 128 (or full n) so the transposed (f, tm) out block is legal
    tm = _pick_tile(n, 128, min(512, max(128, n // 2)))
    tk = _pick_tile(n, 128, 2048)
    blk = tm * tk * 2 + tk * f * 2 + tm * 4 + f * 4 + tm * f * (4 + 2 + 2)
    out_shapes = (jax.ShapeDtypeStruct((n, f), jnp.bfloat16),   # E (row-normalized)
                  jax.ShapeDtypeStruct((f, n), jnp.bfloat16))   # E^T
    return pl.pallas_call(
        _gcn_agg_rownorm_kernel,
        out_shape=out_shapes,
        grid=(n // tm, n // tk),
        in_specs=[
            pl.BlockSpec((tm, tk), lambda i, k: (i, k)),
            pl.BlockSpec((tk, f), lambda i, k: (k, 0)),
            pl.BlockSpec((tm, 1), lambda i, k: (i, 0)),
            pl.BlockSpec((1, f), lambda i, k: (0, 0)),
        ],
        out_specs=(pl.BlockSpec((tm, f), lambda i, k: (i, 0)),
                   pl.BlockSpec((f, tm), lambda i, k: (0, i))),
        scratch_shapes=[pltpu.VMEM((tm, f), jnp.float32)],
        compiler_params=_cparams(("parallel", "arbitrary"), blk),
    )(a_bf, y_bf, dinv, b)


def topk_threshold(emb_n, emb_t, k):
    n, f = emb_n.shape
    tm = _row_tile(n, 8, 256)
    tnc = _pick_tile(n, 128, 1024)
    blk = tm * f * 2 + f * tnc * 2 + tm * 4 + tm * max(k, 8) * 4 + tm * (tnc + k) * 8
    return pl.pallas_call(
        functools.partial(_topk_threshold_kernel, k=k),
        out_shape=jax.ShapeDtypeStruct((n, 1), jnp.float32),
        grid=(n // tm, n // tnc),
        in_specs=[
            pl.BlockSpec((tm, f), lambda i, j: (i, 0)),
            pl.BlockSpec((f, tnc), lambda i, j: (0, j)),
        ],
        out_specs=pl.BlockSpec((tm, 1), lambda i, j: (i, 0)),
        scratch_shapes=[pltpu.VMEM((tm, k), jnp.float32)],
        compiler_params=_cparams(("parallel", "arbitrary"), blk),
    )(emb_n, emb_t)


def sym_fuse(emb_n, emb_t, kth, kth_t, adj_bf):
    n, f = emb_n.shape
    tm = _row_tile(n, 8, 256)
    tn = _pick_tile(n, 128, 1024)
    blk = (tm * f * 2 + f * tn * 2 + tm * 4 + tn * 4 + tm * tn * 2      # inputs
           + tm * tn * (4 + 2) + tm * 4 + tm * 4)                       # outputs + scratch
    out_shapes = (jax.ShapeDtypeStruct((n, n), jnp.float32),    # A_new (symmetrized)
                  jax.ShapeDtypeStruct((n, n), jnp.bfloat16),   # A_final (bf16)
                  jax.ShapeDtypeStruct((n, 1), jnp.float32))    # D^-1/2 of A_final
    return pl.pallas_call(
        _sym_fuse_kernel,
        out_shape=out_shapes,
        grid=(n // tm, n // tn),
        in_specs=[
            pl.BlockSpec((tm, f), lambda i, j: (i, 0)),
            pl.BlockSpec((f, tn), lambda i, j: (0, j)),
            pl.BlockSpec((tm, 1), lambda i, j: (i, 0)),
            pl.BlockSpec((1, tn), lambda i, j: (0, j)),
            pl.BlockSpec((tm, tn), lambda i, j: (i, j)),
        ],
        out_specs=(pl.BlockSpec((tm, tn), lambda i, j: (i, j)),
                   pl.BlockSpec((tm, tn), lambda i, j: (i, j)),
                   pl.BlockSpec((tm, 1), lambda i, j: (i, 0))),
        scratch_shapes=[pltpu.VMEM((tm, 1), jnp.float32)],
        compiler_params=_cparams(("parallel", "arbitrary"), blk),
    )(emb_n, emb_t, kth, kth_t, adj_bf)


# --------------------------------------------------------------------------
# GRCN forward
# --------------------------------------------------------------------------

def grcn_forward(x, adj, params, num_features, k):
    n = adj.shape[0]

    # graph-learner branch: degree + exact bf16 cast in one pass over Adj;
    # sym_norm fused into the GCN layers via the D^-1/2 vector.
    adj_bf, dinv_g = degree_cast(adj)
    y1 = xw_scale(x, params["Wg1"], dinv_g)
    h1 = gcn_aggregate(adj_bf, y1, dinv_g, params["bg1"], apply_relu=True)
    y2 = xw_scale(h1, params["Wg2"], dinv_g)
    # second layer + row-L2 normalization fused; emits E and E^T (bf16)
    emb_n, emb_t = gcn_aggregate_rownorm(adj_bf, y2, dinv_g, params["bg2"])

    # similarity graph: E1·E1^T + E2·E2^T (column split at F/2) == E·E^T, so one
    # matmul; per-row top-K threshold, then symmetrize + fuse + revised-graph degree
    # in a single pass — S never touches HBM.
    kth = topk_threshold(emb_n, emb_t, k)        # (N, 1) per-row K-th largest similarity
    kth_t = kth.reshape(1, n)                    # column-threshold view for sym_fuse
    adj_new, adj_final_bf, dinv_t = sym_fuse(emb_n, emb_t, kth, kth_t, adj_bf)

    # task branch on the revised graph (dinv_t accumulated in f32 inside sym_fuse).
    z1 = xw_scale(x, params["Wt1"], dinv_t)
    g1 = gcn_aggregate(adj_final_bf, z1, dinv_t, params["bt1"], apply_relu=True)
    z2 = xw_scale(g1, params["Wt2"], dinv_t)
    logits = gcn_aggregate(adj_final_bf, z2, dinv_t, params["bt2"], apply_relu=False)

    # TODO(synk): adjs['final'] is returned in bf16 (exact for the 0/1 Adj part,
    # ~3 decimal digits for the similarity part); the f32 copy was dropped to cut
    # sym_fuse HBM writes per the perf review.
    adjs = {"new": adj_new, "final": adj_final_bf}
    return logits, adjs, adj_new


# --------------------------------------------------------------------------
# Driver
# --------------------------------------------------------------------------

def _glorot(key, shape):
    fan_in, fan_out = shape
    lim = jnp.sqrt(6.0 / (fan_in + fan_out))
    return jax.random.uniform(key, shape, jnp.float32, -lim, lim)


if __name__ == "__main__":
    NUM_NODES = 16
    NUM_FEATURES = 8        # must be even (similarity splits it in half)
    NUM_CLASSES = 4
    HID_G = 16              # gsl n_hidden_1
    HID_T = 32              # model n_hidden
    K = 4                   # gsl K

    key = jax.random.PRNGKey(0)
    ks = jax.random.split(key, 8)

    # node features
    x = jax.random.normal(ks[0], (NUM_NODES, NUM_FEATURES), jnp.float32)

    # random symmetric binary adjacency (with self-loops so no isolated node)
    r = jax.random.uniform(ks[1], (NUM_NODES, NUM_NODES))
    upper = jnp.triu((r < 0.3).astype(jnp.float32), k=1)
    adj = upper + upper.T + jnp.eye(NUM_NODES, dtype=jnp.float32)

    # deterministic parameter init (graph GCN maps F -> HID_G -> F so the
    # half-split similarity is well defined; task GCN maps F -> HID_T -> C)
    params = {
        "Wg1": _glorot(ks[2], (NUM_FEATURES, HID_G)),
        "bg1": jnp.zeros((1, HID_G), jnp.float32),
        "Wg2": _glorot(ks[3], (HID_G, NUM_FEATURES)),
        "bg2": jnp.zeros((1, NUM_FEATURES), jnp.float32),
        "Wt1": _glorot(ks[4], (NUM_FEATURES, HID_T)),
        "bt1": jnp.zeros((1, HID_T), jnp.float32),
        "Wt2": _glorot(ks[5], (HID_T, NUM_CLASSES)),
        "bt2": jnp.zeros((1, NUM_CLASSES), jnp.float32),
    }

    logits, adjs, adj_new = grcn_forward(x, adj, params, NUM_FEATURES, K)
    jax.block_until_ready((logits, adjs["final"], adj_new))

    assert logits.shape == (NUM_NODES, NUM_CLASSES)
    assert adj_new.shape == (NUM_NODES, NUM_NODES)
    assert adjs["final"].shape == (NUM_NODES, NUM_NODES)
    assert bool(jnp.isfinite(logits).all())
    assert bool(jnp.isfinite(adj_new).all())
    print("KERNEL_OK")
</pallas_src>

<mosaic_0001>
module attributes {stable_mosaic.version = 11 : i64} {
  func.func @_degree_cast_kernel(%arg0: i32, %arg1: i32, %arg2: memref<8x16xf32, #tpu.memory_space<vmem>>, %arg3: memref<8x16xbf16, #tpu.memory_space<vmem>>, %arg4: memref<8x1xf32, #tpu.memory_space<vmem>>, %arg5: memref<8x1xf32, #tpu.memory_space<vmem>>) attributes {dimension_semantics = [#tpu.dimension_semantics<parallel>, #tpu.dimension_semantics<arbitrary>], iteration_bounds = array<i64: 2, 1>, scalar_prefetch = 0 : i64, scratch_operands = 1 : i64, tpu.core_type = #tpu.core_type<tc>, window_params = [{transform_indices = @transform_0, window_bounds = array<i64: 8, 16>}, {transform_indices = @transform_1, window_bounds = array<i64: 8, 16>}, {transform_indices = @transform_2, window_bounds = array<i64: 8, 1>}]} {
    %c0_i32 = arith.constant 0 : i32
    %0 = arith.cmpi eq, %arg1, %c0_i32 : i32
    %1 = arith.extui %0 : i1 to i32
    %c0_i32_0 = arith.constant 0 : i32
    %2 = arith.cmpi ne, %1, %c0_i32_0 : i32
    scf.if %2 {
      %cst_10 = arith.constant 0.000000e+00 : f32
      %14 = vector.broadcast %cst_10 : f32 to vector<8x1xf32>
      %c0_11 = arith.constant 0 : index
      %c0_12 = arith.constant 0 : index
      %15 = vector.load %arg5[%c0_11, %c0_12] : memref<8x1xf32, #tpu.memory_space<vmem>>, vector<8x1xf32>
      tpu.vector_store %arg5[%c0_11, %c0_12], %14 {strides = array<i32>} : memref<8x1xf32, #tpu.memory_space<vmem>>, vector<8x1xf32>,
    } else {
    }
    %c0 = arith.constant 0 : index
    %c0_1 = arith.constant 0 : index
    %3 = vector.load %arg2[%c0, %c0_1] : memref<8x16xf32, #tpu.memory_space<vmem>>, vector<8x16xf32>
    %4 = arith.truncf %3 : vector<8x16xf32> to vector<8x16xbf16>
    %c0_2 = arith.constant 0 : index
    %c0_3 = arith.constant 0 : index
    %5 = vector.load %arg3[%c0_2, %c0_3] : memref<8x16xbf16, #tpu.memory_space<vmem>>, vector<8x16xbf16>
    tpu.vector_store %arg3[%c0_2, %c0_3], %4 {strides = array<i32>} : memref<8x16xbf16, #tpu.memory_space<vmem>>, vector<8x16xbf16>,
    %c0_4 = arith.constant 0 : index
    %c0_5 = arith.constant 0 : index
    %6 = vector.load %arg5[%c0_4, %c0_5] : memref<8x1xf32, #tpu.memory_space<vmem>>, vector<8x1xf32>
    %cst = arith.constant dense<0.000000e+00> : vector<8xf32>
    %7 = vector.multi_reduction <add>, %3, %cst [1] : vector<8x16xf32> to vector<8xf32>
    %8 = vector.shape_cast %7 : vector<8xf32> to vector<8x1xf32>
    %9 = arith.addf %6, %8 : vector<8x1xf32>
    %c0_6 = arith.constant 0 : index
    %c0_7 = arith.constant 0 : index
    %10 = vector.load %arg5[%c0_6, %c0_7] : memref<8x1xf32, #tpu.memory_space<vmem>>, vector<8x1xf32>
    tpu.vector_store %arg5[%c0_6, %c0_7], %9 {strides = array<i32>} : memref<8x1xf32, #tpu.memory_space<vmem>>, vector<8x1xf32>,
    %c0_i32_8 = arith.constant 0 : i32
    %11 = arith.cmpi eq, %arg1, %c0_i32_8 : i32
    %12 = arith.extui %11 : i1 to i32
    %c0_i32_9 = arith.constant 0 : i32
    %13 = arith.cmpi ne, %12, %c0_i32_9 : i32
    scf.if %13 {
      %c0_10 = arith.constant 0 : index
      %c0_11 = arith.constant 0 : index
      %14 = vector.load %arg5[%c0_10, %c0_11] : memref<8x1xf32, #tpu.memory_space<vmem>>, vector<8x1xf32>
      %cst_12 = arith.constant 0.000000e+00 : f32
      %15 = vector.broadcast %cst_12 : f32 to vector<8x1xf32>
      %16 = arith.cmpf ogt, %14, %15 : vector<8x1xf32>
      %17 = math.rsqrt %14 : vector<8x1xf32>
      %cst_13 = arith.constant 0.000000e+00 : f32
      %18 = vector.broadcast %cst_13 : f32 to vector<8x1xf32>
      %19 = arith.select %16, %17, %18 : vector<8x1xi1>, vector<8x1xf32>
      %c0_14 = arith.constant 0 : index
      %c0_15 = arith.constant 0 : index
      %20 = vector.load %arg4[%c0_14, %c0_15] : memref<8x1xf32, #tpu.memory_space<vmem>>, vector<8x1xf32>
      tpu.vector_store %arg4[%c0_14, %c0_15], %19 {strides = array<i32>} : memref<8x1xf32, #tpu.memory_space<vmem>>, vector<8x1xf32>,
    } else {
    }
    return
  }
  func.func @transform_0(%arg0: i32, %arg1: i32) -> (i32, i32) {
    %c0_i32 = arith.constant 0 : i32
    return %arg0, %arg1 : i32, i32
  }
  func.func @transform_1(%arg0: i32, %arg1: i32) -> (i32, i32) {
    %c0_i32 = arith.constant 0 : i32
    return %arg0, %arg1 : i32, i32
  }
  func.func @transform_2(%arg0: i32, %arg1: i32) -> (i32, i32) {
    %c0_i32 = arith.constant 0 : i32
    %c0_i32_0 = arith.constant 0 : i32
    return %arg0, %c0_i32 : i32, i32
  }
}

</mosaic_0001>

<llo_original>
// kernel: tpu_custom_call.1
$region0: #{tpu_custom_call.1}
  #allocation0 [shape = 'u32[]', space=smem, size = 0x4, offset = 0x4, fixed_abs, tag = 'smem constant byte address 0x4 - core index']
  #allocation1 [shape = 'u32[72,128]{1,0:T(1,128)}', space=vmem, size = 0x9000, scoped, tag = 'internal scratch']
  #allocation2 [shape = 'f32[8,1]{1,0:T(8,128)}', space=vmem, size = 0x1000, scoped, tag = 'scratch operand']
  %s0 = inlined_call_operand.hbm [shape: f32[16,16], index: 0, kind: input, shape index: {}]
  %s1 = inlined_call_operand.hbm [shape: bf16[16,16], index: 1, kind: output, shape index: {0}]
  %s2 = inlined_call_operand.vmem [shape: f32[16,1], index: 2, kind: output, shape index: {1}]
  %3 = xla_tuple %s1, %s2
  %s4 = sld [smem:[#allocation0]]
  $region57: #{tpu_custom_call.1} parent=0
    _
  %s6 = ssub.s32 1, %s4
  %s7 = scalar_select 0, %s6, %s4
  $region1: #{tpu_custom_call.1} parent=0
    #allocation3 [shape = 'u8[8192]{0}', space=vmem, size = 0x2000, scoped, tag = 'input window, operand 0']
    #allocation4 [shape = 's32[2]{0}', space=sflag, size = 0x8, scoped, tag = 'scoped memory for tpu_custom_call.1']
    #allocation5 [shape = 's32[2]{0}', space=sflag, size = 0x8, scoped, tag = 'scoped memory for tpu_custom_call.1']
    #allocation6 [shape = 'u8[4096]{0}', space=vmem, size = 0x1000, scoped, tag = 'output window, operand 0']
    %8 = vsyncpa [#allocation4], 0
    %s9 = scalar_lea.sflag [#allocation4], 1
    %10 = vsyncpa %s9, 0
    %11 = vsyncpa [#allocation5], 0
    %s12 = scalar_lea.sflag [#allocation5], 1
    %13 = vsyncpa %s12, 0
    loop: start=0, step=1, limit=4
    $region2: #{tpu_custom_call.1} parent=1 // loop_pre_header
      _
    $region3: #{tpu_custom_call.1} parent=1 // loop_header
      %s15 = sphi 0, %s19
      %p16 = scmp.ge.s32.totalorder %s15, 4
      %s22 = sphi 0, %s34
      %s23 = sphi 0, %s30
      %s24 = sphi 0, %s22
      %s25 = sphi 0, %s23
      %s26 = sphi 0, %s24
      %s27 = sphi 0, %s25
      %s39 = sphi 0, %s41
      %s42 = sphi 0, %s39
      %s43 = sphi 0, %s42
      %s59 = sphi 0, %s43
      %s67 = sphi 0, %s69
      %s70 = sphi 0, %s67
      %s71 = sphi 0, %s70
      %s87 = sphi 0, %s71
      %s93 = sphi 0, %s95
      %s96 = sphi 0, %s93
      %s97 = sphi 0, %s96
      %s113 = sphi 0, %s97
    $region4: #{tpu_custom_call.1} parent=1 // loop_header_branch
      %18 = sbr.rel (%p16) target = $region8
    $region5: #{tpu_custom_call.1} parent=1 // loop_body
      %s20 = ssub.s32 %s15, 1
      %s21 = ssub.s32 %s15, 2
      %s28 = sadd.s32 1, %s23
      %p29 = scmp.ge.s32.totalorder %s28, 1
      %s30 = scalar_select %p29, 0, %s28
      %s31 = sadd.s32 1, %s22
      %s32 = scalar_select %p29, %s31, %s22
      %p33 = scmp.ge.s32.totalorder %s32, 2
      %s34 = scalar_select %p33, 0, %s32
      %s35 = ssub.s32 %s22, %s34
      %s36 = ssub.s32 %s23, %s30
      %s37 = sor.u32 %s35, %s36
      %p38 = scmp.eq.s32.totalorder %s37, 0
      %s40 = sadd.s32 %s39, 1
      %s41 = scalar_select %p38, %s39, %s40
      %p44 = pneg %p38
      %p45 = scmp.eq.s32.totalorder %s15, 1
      %p46 = por %p44, %p45
      %p47 = scmp.ne.s32.totalorder %s39, %s42
      %p48 = scmp.eq.s32.totalorder %s15, 0
      %p49 = por %p47, %p48
      %p50 = scmp.ne.s32.totalorder %s39, %s42
      %p51 = scmp.eq.s32.totalorder %s20, 1
      %p52 = por %p50, %p51
      %p53 = scmp.ne.s32.totalorder %s42, %s43
      %p54 = scmp.eq.s32.totalorder %s20, 0
      %p55 = por %p53, %p54
      %p56 = scmp.ne.s32.totalorder %s42, %s43
      %p57 = scmp.eq.s32.totalorder %s21, 1
      %p58 = por %p56, %p57
      %p60 = scmp.ne.s32.totalorder %s43, %s59
      %p61 = scmp.eq.s32.totalorder %s21, 0
      %p62 = por %p60, %p61
      %s63 = ssub.s32 %s22, %s34
      %s64 = ssub.s32 %s23, %s30
      %s65 = sor.u32 %s63, %s64
      %p66 = scmp.eq.s32.totalorder %s65, 0
      %s68 = sadd.s32 %s67, 1
      %s69 = scalar_select %p66, %s67, %s68
      %p72 = pneg %p66
      %p73 = scmp.eq.s32.totalorder %s15, 1
      %p74 = por %p72, %p73
      %p75 = scmp.ne.s32.totalorder %s67, %s70
      %p76 = scmp.eq.s32.totalorder %s15, 0
      %p77 = por %p75, %p76
      %p78 = scmp.ne.s32.totalorder %s67, %s70
      %p79 = scmp.eq.s32.totalorder %s20, 1
      %p80 = por %p78, %p79
      %p81 = scmp.ne.s32.totalorder %s70, %s71
      %p82 = scmp.eq.s32.totalorder %s20, 0
      %p83 = por %p81, %p82
      %p84 = scmp.ne.s32.totalorder %s70, %s71
      %p85 = scmp.eq.s32.totalorder %s21, 1
      %p86 = por %p84, %p85
      %p88 = scmp.ne.s32.totalorder %s71, %s87
      %p89 = scmp.eq.s32.totalorder %s21, 0
      %p90 = por %p88, %p89
      %s91 = ssub.s32 %s22, %s34
      %p92 = scmp.eq.s32.totalorder %s91, 0
      %s94 = sadd.s32 %s93, 1
      %s95 = scalar_select %p92, %s93, %s94
      %p98 = pneg %p92
      %p99 = scmp.eq.s32.totalorder %s15, 1
      %p100 = por %p98, %p99
      %p101 = scmp.ne.s32.totalorder %s93, %s96
      %p102 = scmp.eq.s32.totalorder %s15, 0
      %p103 = por %p101, %p102
      %p104 = scmp.ne.s32.totalorder %s93, %s96
      %p105 = scmp.eq.s32.totalorder %s20, 1
      %p106 = por %p104, %p105
      %p107 = scmp.ne.s32.totalorder %s96, %s97
      %p108 = scmp.eq.s32.totalorder %s20, 0
      %p109 = por %p107, %p108
      %p110 = scmp.ne.s32.totalorder %s96, %s97
      %p111 = scmp.eq.s32.totalorder %s21, 1
      %p112 = por %p110, %p111
      %p114 = scmp.ne.s32.totalorder %s97, %s113
      %p115 = scmp.eq.s32.totalorder %s21, 0
      %p116 = por %p114, %p115
      %p117 = scmp.le.s32.totalorder 1, %s15
      %p118 = scmp.lt.s32.totalorder %s15, 3
      %p119 = pnand %p117, %p118
      %p120 = pneg %p119
      // Predicated region
      $region9: #{tpu_custom_call.1} parent=5 // pred_check
        _
      $region10: #{tpu_custom_call.1} parent=5 // pred_check_branch
        %122 = sbr.rel (%p119) target = $region12
      $region11: #{tpu_custom_call.1} parent=5 // pred_region
        %s123 = ssub.s32 %s15, 1
      $region12: #{tpu_custom_call.1} parent=5 // pred_fallthru
        _
      %p124 = scmp.lt.s32.totalorder %s15, 2
      // Predicated region
      $region13: #{tpu_custom_call.1} parent=5 // pred_check
        %p125 = pneg %p124
      $region14: #{tpu_custom_call.1} parent=5 // pred_check_branch
        %127 = sbr.rel (%p125) target = $region16
      $region15: #{tpu_custom_call.1} parent=5 // pred_region
        // Predicated region
        $region17: #{tpu_custom_call.1} parent=15 // pred_check
          %p128 = pneg %p49
        $region18: #{tpu_custom_call.1} parent=15 // pred_check_branch
          %130 = sbr.rel (%p128) target = $region20
        $region19: #{tpu_custom_call.1} parent=15 // pred_region
          %s131 = sand.u32 %s39, 1
          %s132 = scalar_lea.sflag [#allocation4], %s131
          %s133 = sand.u32 %s39, 1
          %s134 = smul.addr %s133, 8
          %s135 = scalar_lea.vmem [#allocation3], %s134
          %137 = vsyncadd %s132, 0
          %s138 = sadd.s32 %s23, %s22
          %s139 = smul.addr %s138, 8
          %s140 = scalar_lea.hbm %s0, %s139
          %s142 = sshll.u32 %s140, 4
          %s143 = int_to_ptr.hbm [resolvable:$true] %s142
          %s144 = sshll.u32 %s135, 4
          %s145 = int_to_ptr.vmem [resolvable:$true] %s144
          %147 = dma.hbm_to_vmem [thread:$0]  %s143, 128, %s145, %s132
        $region20: #{tpu_custom_call.1} parent=15 // pred_fallthru
          _
      $region16: #{tpu_custom_call.1} parent=5 // pred_fallthru
        _
      %p148 = scmp.le.s32.totalorder 1, %s15
      %p149 = scmp.lt.s32.totalorder %s15, 3
      %p150 = pnand %p148, %p149
      %p151 = pneg %p150
      // Predicated region
      $region21: #{tpu_custom_call.1} parent=5 // pred_check
        _
      $region22: #{tpu_custom_call.1} parent=5 // pred_check_branch
        %153 = sbr.rel (%p150) target = $region24
      $region23: #{tpu_custom_call.1} parent=5 // pred_region
        %s154 = ssub.s32 %s15, 1
        %s155 = sand.u32 %s42, 1
        %s156 = scalar_lea.sflag [#allocation4], %s155
        %s157 = sand.u32 %s42, 1
        %s158 = smul.addr %s157, 8
        %s159 = scalar_lea.vmem [#allocation3], %s158
        // Predicated region
        $region25: #{tpu_custom_call.1} parent=23 // pred_check
          %p160 = pneg %p55
        $region26: #{tpu_custom_call.1} parent=23 // pred_check_branch
          %162 = sbr.rel (%p160) target = $region28
        $region27: #{tpu_custom_call.1} parent=23 // pred_region
          %164 = dma.done %s156, 128
        $region28: #{tpu_custom_call.1} parent=23 // pred_fallthru
          _
        %s165 = sand.u32 %s42, 1
        %s166 = scalar_lea.sflag [#allocation4], %s165
        %s167 = sand.u32 %s42, 1
        %s168 = smul.addr %s167, 8
        %s169 = scalar_lea.vmem [#allocation3], %s168
        %p170 = pneg %p55
        %p171 = pneg %p52
        %p172 = pneg %p83
        %p173 = pneg %p80
        %s174 = sand.u32 %s70, 1
        %s175 = scalar_lea.sflag [#allocation5], %s174
        %s176 = sand.u32 %s70, 1
        %s177 = smul.addr %s176, 4
        %s178 = scalar_lea.vmem [#allocation6], %s177
        %p179 = pneg %p109
        %p180 = pneg %p106
        %p181 = scmp.lt.s32.totalorder %s24, 1
        %s182 = scalar_select %p181, %s24, 1
        %s183 = smul.addr %s182, 8
        %s184 = scalar_lea.vmem %s2, %s183
        %p185 = scmp.lt.s32.totalorder %s24, 1
        %s186 = scalar_select %p185, %s24, 1
        %s187 = smul.addr %s186, 8
        %s188 = scalar_lea.vmem %s2, %s187
        %p189 = scmp.eq.s32.totalorder %s25, 0
        // Predicated region
        $region29: #{tpu_custom_call.1} parent=23 // pred_check
          %p190 = pneg %p189
        $region30: #{tpu_custom_call.1} parent=23 // pred_check_branch
          %192 = sbr.rel (%p190) target = $region32
        $region31: #{tpu_custom_call.1} parent=23 // pred_region
          %vm193 = vcmask 7168
          %194 = vst.msk [vmem:[#allocation2] sm:$0xff] %vm193, 0.0
        $region32: #{tpu_custom_call.1} parent=23 // pred_fallthru
          _
        %v195 = vld [vmem:[%s159] sm:$0xff]
        %v196 = vpack.c.bf16 %v195, %v195
        %vm197 = vcmask 125952
        %198 = vst.msk [vmem:[%s178] sm:$0xf] %vm197, %v196
        %v199 = vld [vmem:[#allocation2] sm:$0xff]
        %vm200 = vcmask 130048
        %v201 = vsel %vm200, %v195, 0.0
        %202 = vadd.xlane.f32.xlu0 %v201
        %v203 = vpop.xlane.xlu0 %202
        %v204 = vadd.f32 %v199, %v203
        %vm205 = vcmask 7168
        %206 = vst.msk [vmem:[#allocation2] sm:$0xff] %vm205, %v204
        // Predicated region
        $region33: #{tpu_custom_call.1} parent=23 // pred_check
          %p207 = pneg %p189
        $region34: #{tpu_custom_call.1} parent=23 // pred_check_branch
          %209 = sbr.rel (%p207) target = $region36
        $region35: #{tpu_custom_call.1} parent=23 // pred_region
          %v210 = vld [vmem:[#allocation2] sm:$0xff]
          %vm211 = vcmp.gt.f32.partialorder %v210, 0.0
          %v212 = vrsqrt.pop %v210
          %v213 = vmul.f32 %v212, %v210
          %v214 = vmul.f32 %v213, %v212
          %v215 = vmul.f32 0.5, %v214
          %v216 = vsub.f32 1.5, %v215
          %v217 = vmul.f32 %v212, %v216
          %vm218 = vweird.f32 %v210
          %vm219 = vweird.f32 %v212
          %vm220 = vmor %vm218, %vm219
          %v221 = vsel %vm220, %v212, %v217
          %v222 = vsel %vm211, %v221, 0.0
          %223 = vst.msk [vmem:[%s188] sm:$0xff] %vm205, %v222
        $region36: #{tpu_custom_call.1} parent=23 // pred_fallthru
          _
        %s224 = sand.u32 %s70, 1
        %s225 = scalar_lea.sflag [#allocation5], %s224
        %s226 = sand.u32 %s70, 1
        %s227 = smul.addr %s226, 4
        %s228 = scalar_lea.vmem [#allocation6], %s227
        %p229 = scmp.lt.s32.totalorder %s24, 1
        %s230 = scalar_select %p229, %s24, 1
        %s231 = smul.addr %s230, 8
        %s232 = scalar_lea.vmem %s2, %s231
        // Predicated region
        $region37: #{tpu_custom_call.1} parent=23 // pred_check
          %p233 = pneg %p80
        $region38: #{tpu_custom_call.1} parent=23 // pred_check_branch
          %235 = sbr.rel (%p233) target = $region40
        $region39: #{tpu_custom_call.1} parent=23 // pred_region
          %237 = vsyncadd %s225, 0
          %s238 = sadd.s32 %s25, %s24
          %s239 = smul.addr %s238, 4
          %s240 = scalar_lea.hbm %s1, %s239
          %s242 = sshll.u32 %s228, 4
          %s243 = int_to_ptr.vmem [resolvable:$true] %s242
          %s244 = sshll.u32 %s240, 4
          %s245 = int_to_ptr.hbm [resolvable:$true] %s244
          %247 = dma.vmem_to_hbm [thread:$0]  %s243, 64, %s245, %s225
        $region40: #{tpu_custom_call.1} parent=23 // pred_fallthru
          _
        // Predicated region
        $region41: #{tpu_custom_call.1} parent=23 // pred_check
          %p248 = pneg %p106
        $region42: #{tpu_custom_call.1} parent=23 // pred_check_branch
          %250 = sbr.rel (%p248) target = $region44
        $region43: #{tpu_custom_call.1} parent=23 // pred_region
          _
        $region44: #{tpu_custom_call.1} parent=23 // pred_fallthru
          _
      $region24: #{tpu_custom_call.1} parent=5 // pred_fallthru
        _
      %p251 = scmp.le.s32.totalorder 2, %s15
      // Predicated region
      $region45: #{tpu_custom_call.1} parent=5 // pred_check
        %p252 = pneg %p251
      $region46: #{tpu_custom_call.1} parent=5 // pred_check_branch
        %254 = sbr.rel (%p252) target = $region48
      $region47: #{tpu_custom_call.1} parent=5 // pred_region
        %s255 = ssub.s32 %s15, 2
        // Predicated region
        $region49: #{tpu_custom_call.1} parent=47 // pred_check
          %p256 = pneg %p86
        $region50: #{tpu_custom_call.1} parent=47 // pred_check_branch
          %258 = sbr.rel (%p256) target = $region52
        $region51: #{tpu_custom_call.1} parent=47 // pred_region
          %s259 = sand.u32 %s71, 1
          %s260 = scalar_lea.sflag [#allocation5], %s259
          %s261 = sand.u32 %s71, 1
          %s262 = smul.addr %s261, 4
          %s263 = scalar_lea.vmem [#allocation6], %s262
          %265 = dma.done %s260, 64
        $region52: #{tpu_custom_call.1} parent=47 // pred_fallthru
          _
        // Predicated region
        $region53: #{tpu_custom_call.1} parent=47 // pred_check
          %p266 = pneg %p112
        $region54: #{tpu_custom_call.1} parent=47 // pred_check_branch
          %268 = sbr.rel (%p266) target = $region56
        $region55: #{tpu_custom_call.1} parent=47 // pred_region
          %p269 = scmp.lt.s32.totalorder %s26, 1
          %s270 = scalar_select %p269, %s26, 1
          %s271 = smul.addr %s270, 8
          %s272 = scalar_lea.vmem %s2, %s271
        $region56: #{tpu_custom_call.1} parent=47 // pred_fallthru
          _
      $region48: #{tpu_custom_call.1} parent=5 // pred_fallthru
        _
    $region6: #{tpu_custom_call.1} parent=1 // loop_footer
      %s19 = sadd.s32 1, %s15
    $region7: #{tpu_custom_call.1} parent=1 // loop_footer_branch
      %14 = sbr.rel target = $region3
    $region8: #{tpu_custom_call.1} parent=1 // loop_exit
      _
    %273 = vsyncpa [#allocation4], 1
    %s274 = scalar_lea.sflag [#allocation4], 1
    %275 = vsyncpa %s274, 1
    %276 = vsyncpa [#allocation5], 1
    %s277 = scalar_lea.sflag [#allocation5], 1
    %278 = vsyncpa %s277, 1

</llo_original>
